<compile_context>
chip_gen: v5e
topology: v5e:2x2
jax: 0.10.0
libtpu: 0.0.40
codegen_flags: <defaults>
</compile_context>

<pallas_src>
import numpy as np
import jax
import jax.numpy as jnp
from jax.experimental import pallas as pl
from jax.experimental.pallas import tpu as pltpu

_LANE = 128
_SUBLANE = 8


def _round_up(x, m):
    return ((x + m - 1) // m) * m


# ----------------------------------------------------------------------------
# Fused residual-net kernel: [skip | MLP-layer-0] fused dot, remaining MLP
# layers with tanh, residual add, one lane-dense store per batch tile.
# ----------------------------------------------------------------------------
def _make_fused_kernel(n_mlp_layers, skip_cols):
    def kernel(*refs):
        x_ref = refs[0]
        w0_ref, b0_ref = refs[1], refs[2]
        mlp_refs = refs[3:-1]
        o_ref = refs[-1]

        x = x_ref[...]                                              # (TB, Din_p)
        # One MXU dot covers both the skip linear and MLP layer 0 (same K).
        y0 = jnp.dot(x, w0_ref[...],
                     preferred_element_type=jnp.float32) + b0_ref[...]
        if n_mlp_layers == 0:
            o_ref[...] = y0                                         # skip only
        else:
            acc = y0[:, :skip_cols]                                 # lane-aligned split
            h = jnp.tanh(y0[:, skip_cols:])                         # EUP
            for li in range(1, n_mlp_layers):                       # static unroll
                w = mlp_refs[2 * (li - 1)][...]
                b = mlp_refs[2 * (li - 1) + 1][...]
                h = jnp.dot(h, w, preferred_element_type=jnp.float32) + b
                if li < n_mlp_layers - 1:
                    h = jnp.tanh(h)
            o_ref[...] = acc + h                                    # residual + store

    return kernel


def simple_res_net_forward(x, wl, bl, mlp_params, *, block_b=512):
    """x: (B, n_in) f32; wl: (n_in, n_out); bl: (n_out,);
       mlp_params: list of (W, b) with W: (d_in, d_out), b: (d_out,)."""
    B, n_in = x.shape
    n_out = wl.shape[1]
    n_mlp = len(mlp_params)
    # feed_forward_nn asserts n_hidden_layers > 0, so the MLP branch is either
    # absent or has >= 2 linear layers; layer 0 is always followed by tanh.
    assert n_mlp != 1, "simple_res_net never has a single-layer MLP branch"

    n_out_p = _round_up(n_out, _LANE)       # lane-dense output columns
    n_in_p = _round_up(n_in, _SUBLANE)      # sublane-aligned input features
    f32 = jnp.float32

    # Skip-branch weight, padded rows (zero x columns) and cols (zero outputs).
    wl_p = jnp.pad(wl.astype(f32), ((0, n_in_p - n_in), (0, n_out_p - n_out)))
    bl_p = jnp.pad(bl.astype(f32), (0, n_out_p - n_out)).reshape(1, n_out_p)

    rest = []
    hidden = 0
    if n_mlp == 0:
        w0, b0 = wl_p, bl_p
    else:
        w_first, b_first = mlp_params[0]
        hidden = int(w_first.shape[1])
        w_first = jnp.pad(w_first.astype(f32), ((0, n_in_p - n_in), (0, 0)))
        # Fuse skip + MLP layer 0 (same K) into one (n_in_p, n_out_p + H) dot.
        w0 = jnp.concatenate([wl_p, w_first], axis=1)
        b0 = jnp.concatenate([bl_p, b_first.astype(f32).reshape(1, -1)], axis=1)
        for i in range(1, n_mlp):
            w, b = mlp_params[i]
            w = w.astype(f32)
            b = b.astype(f32)
            if i == n_mlp - 1:
                w = jnp.pad(w, ((0, 0), (0, n_out_p - n_out)))
                b = jnp.pad(b, (0, n_out_p - n_out))
            rest.append((w, b.reshape(1, -1)))

    # Batch tiling: one tile per grid step, multiple of 8 sublanes.  No forced
    # split: on single-TC v5e/v6e extra steps are pure prologue overhead; on
    # v7x the "parallel" axis shards across the 2 TCs once B > block_b.
    tb = _round_up(max(1, min(block_b, B)), _SUBLANE)
    b_pad = _round_up(B, tb)

    x = x.astype(f32)
    if b_pad != B or n_in_p != n_in:
        x_p = jnp.pad(x, ((0, b_pad - B), (0, n_in_p - n_in)))
    else:
        x_p = x

    kernel = _make_fused_kernel(n_mlp, n_out_p)

    def const_spec(shape):
        return pl.BlockSpec(shape, lambda i: (0, 0))   # VMEM-resident constant

    in_specs = [pl.BlockSpec((tb, n_in_p), lambda i: (i, 0)),
                const_spec(w0.shape),
                const_spec(b0.shape)]
    args = [x_p, w0, b0]
    for w, b in rest:
        in_specs.append(const_spec(w.shape))
        in_specs.append(const_spec(b.shape))
        args.append(w)
        args.append(b)

    # Advisory cost estimate (helps XLA schedule around the wrapper pad/slice).
    flops = 2 * b_pad * int(w0.shape[0]) * int(w0.shape[1])
    weight_elems = int(w0.size) + int(b0.size)
    for w, b in rest:
        flops += 2 * b_pad * int(w.shape[0]) * int(w.shape[1])
        weight_elems += int(w.size) + int(b.size)
    transcendentals = b_pad * hidden * max(0, n_mlp - 1)
    bytes_accessed = 4 * (b_pad * n_in_p + b_pad * n_out_p + weight_elems)

    out = pl.pallas_call(
        kernel,
        out_shape=jax.ShapeDtypeStruct((b_pad, n_out_p), jnp.float32),
        grid=(b_pad // tb,),
        in_specs=in_specs,
        out_specs=pl.BlockSpec((tb, n_out_p), lambda i: (i, 0)),
        compiler_params=pltpu.CompilerParams(
            dimension_semantics=("parallel",)),
        cost_estimate=pl.CostEstimate(flops=flops,
                                      transcendentals=transcendentals,
                                      bytes_accessed=bytes_accessed),
    )(*args)
    # TODO(synk): consumers that accept the padded (b_pad, 128) layout should
    # skip this slice to save an extra HBM round-trip at large B.
    return out[:B, :n_out]


# ----------------------------------------------------------------------------
# Module equivalent of deepSI simple_res_net (Tanh activation).
# ----------------------------------------------------------------------------
class SimpleResNetPallas:
    def __init__(self, n_in=6, n_out=5, n_nodes_per_layer=64, n_hidden_layers=2,
                 activation="tanh", key=None):
        assert activation == "tanh"
        key = jax.random.PRNGKey(0) if key is None else key

        def lin(k, fan_in, fan_out, zero_bias):
            # PyTorch-default-like uniform init; feed_forward_nn biases are 0.
            kw, kb = jax.random.split(k)
            bound = 1.0 / np.sqrt(fan_in)
            w = jax.random.uniform(kw, (fan_in, fan_out),
                                   minval=-bound, maxval=bound, dtype=jnp.float32)
            if zero_bias:
                b = jnp.zeros((fan_out,), jnp.float32)
            else:
                b = jax.random.uniform(kb, (fan_out,),
                                       minval=-bound, maxval=bound, dtype=jnp.float32)
            return w, b

        keys = jax.random.split(key, n_hidden_layers + 2)
        self.wl, self.bl = lin(keys[0], n_in, n_out, zero_bias=False)
        self.mlp = []
        if n_hidden_layers > 0:
            dims = [n_in] + [n_nodes_per_layer] * n_hidden_layers + [n_out]
            for li in range(n_hidden_layers + 1):
                w, b = lin(keys[li + 1], dims[li], dims[li + 1], zero_bias=True)
                self.mlp.append((w, b))

    def __call__(self, x):
        return simple_res_net_forward(x, self.wl, self.bl, self.mlp)


# ----------------------------------------------------------------------------
# Pure-JAX reference (same math) for validation.
# ----------------------------------------------------------------------------
def _reference(x, wl, bl, mlp):
    y = jnp.dot(x, wl) + bl
    if mlp:
        h = x
        for i, (w, b) in enumerate(mlp):
            h = jnp.dot(h, w) + b
            if i < len(mlp) - 1:
                h = jnp.tanh(h)
        y = y + h
    return y


if __name__ == "__main__":
    key = jax.random.PRNGKey(0)
    x_key, p_key, x2_key, p2_key = jax.random.split(key, 4)

    # Default deepSI config: n_in=6, n_out=5, H=64, 2 hidden layers.
    B, n_in, n_out, hidden, n_hidden = 32, 6, 5, 64, 2
    x = jax.random.normal(x_key, (B, n_in), dtype=jnp.float32)
    mod = SimpleResNetPallas(n_in, n_out, hidden, n_hidden, key=p_key)
    out = jax.block_until_ready(mod(x))
    assert out.shape == (B, n_out), out.shape
    ref = jax.block_until_ready(_reference(x, mod.wl, mod.bl, mod.mlp))
    np.testing.assert_allclose(np.asarray(out), np.asarray(ref),
                               rtol=1e-4, atol=1e-4)

    # n_hidden_layers == 0 path (skip linear only) with an odd batch size to
    # exercise batch padding.
    B2 = 19
    x2 = jax.random.normal(x2_key, (B2, n_in), dtype=jnp.float32)
    mod0 = SimpleResNetPallas(n_in, n_out, hidden, 0, key=p2_key)
    out0 = jax.block_until_ready(mod0(x2))
    assert out0.shape == (B2, n_out), out0.shape
    ref0 = jax.block_until_ready(_reference(x2, mod0.wl, mod0.bl, mod0.mlp))
    np.testing.assert_allclose(np.asarray(out0), np.asarray(ref0),
                               rtol=1e-4, atol=1e-4)

    print("KERNEL_OK")
</pallas_src>

<mosaic_0001>
module attributes {stable_mosaic.version = 11 : i64} {
  func.func @kernel(%arg0: i32, %arg1: memref<32x8xf32, #tpu.memory_space<vmem>>, %arg2: memref<8x192xf32, #tpu.memory_space<vmem>>, %arg3: memref<1x192xf32, #tpu.memory_space<vmem>>, %arg4: memref<64x64xf32, #tpu.memory_space<vmem>>, %arg5: memref<1x64xf32, #tpu.memory_space<vmem>>, %arg6: memref<64x128xf32, #tpu.memory_space<vmem>>, %arg7: memref<1x128xf32, #tpu.memory_space<vmem>>, %arg8: memref<32x128xf32, #tpu.memory_space<vmem>>) attributes {dimension_semantics = [#tpu.dimension_semantics<parallel>], iteration_bounds = array<i64: 1>, scalar_prefetch = 0 : i64, scratch_operands = 0 : i64, tpu.core_type = #tpu.core_type<tc>, window_params = [{transform_indices = @transform_0, window_bounds = array<i64: 32, 8>}, {pipeline_mode = #tpu.pipeline_mode<synchronous>, transform_indices = @transform_1, window_bounds = array<i64: 8, 192>}, {pipeline_mode = #tpu.pipeline_mode<synchronous>, transform_indices = @transform_2, window_bounds = array<i64: 1, 192>}, {pipeline_mode = #tpu.pipeline_mode<synchronous>, transform_indices = @transform_3, window_bounds = array<i64: 64, 64>}, {pipeline_mode = #tpu.pipeline_mode<synchronous>, transform_indices = @transform_4, window_bounds = array<i64: 1, 64>}, {pipeline_mode = #tpu.pipeline_mode<synchronous>, transform_indices = @transform_5, window_bounds = array<i64: 64, 128>}, {pipeline_mode = #tpu.pipeline_mode<synchronous>, transform_indices = @transform_6, window_bounds = array<i64: 1, 128>}, {transform_indices = @transform_7, window_bounds = array<i64: 32, 128>}]} {
    %c0 = arith.constant 0 : index
    %c0_0 = arith.constant 0 : index
    %0 = vector.load %arg1[%c0, %c0_0] : memref<32x8xf32, #tpu.memory_space<vmem>>, vector<32x8xf32>
    %c0_1 = arith.constant 0 : index
    %c0_2 = arith.constant 0 : index
    %1 = vector.load %arg2[%c0_1, %c0_2] : memref<8x192xf32, #tpu.memory_space<vmem>>, vector<8x192xf32>
    %cst = arith.constant dense<0.000000e+00> : vector<32x192xf32>
    %2 = tpu.matmul %0, %1, %cst {dimension_numbers = #tpu.dot_dimension_numbers<[1], [0], [0], [1], [0, 0, 1, 1], [], []>} : vector<32x8xf32>, vector<8x192xf32>, vector<32x192xf32> -> vector<32x192xf32>
    %c0_3 = arith.constant 0 : index
    %c0_4 = arith.constant 0 : index
    %3 = vector.load %arg3[%c0_3, %c0_4] : memref<1x192xf32, #tpu.memory_space<vmem>>, vector<1x192xf32>
    %4 = vector.broadcast %3 : vector<1x192xf32> to vector<32x192xf32>
    %5 = arith.addf %2, %4 : vector<32x192xf32>
    %6 = vector.extract_strided_slice %5 {offsets = [0, 0], sizes = [32, 128], strides = [1, 1]} : vector<32x192xf32> to vector<32x128xf32>
    %7 = vector.extract_strided_slice %5 {offsets = [0, 128], sizes = [32, 64], strides = [1, 1]} : vector<32x192xf32> to vector<32x64xf32>
    %8 = math.tanh %7 : vector<32x64xf32>
    %c0_5 = arith.constant 0 : index
    %c0_6 = arith.constant 0 : index
    %9 = vector.load %arg4[%c0_5, %c0_6] : memref<64x64xf32, #tpu.memory_space<vmem>>, vector<64x64xf32>
    %c0_7 = arith.constant 0 : index
    %c0_8 = arith.constant 0 : index
    %10 = vector.load %arg5[%c0_7, %c0_8] : memref<1x64xf32, #tpu.memory_space<vmem>>, vector<1x64xf32>
    %cst_9 = arith.constant dense<0.000000e+00> : vector<32x64xf32>
    %11 = tpu.matmul %8, %9, %cst_9 {dimension_numbers = #tpu.dot_dimension_numbers<[1], [0], [0], [1], [0, 0, 1, 1], [], []>} : vector<32x64xf32>, vector<64x64xf32>, vector<32x64xf32> -> vector<32x64xf32>
    %12 = vector.broadcast %10 : vector<1x64xf32> to vector<32x64xf32>
    %13 = arith.addf %11, %12 : vector<32x64xf32>
    %14 = math.tanh %13 : vector<32x64xf32>
    %c0_10 = arith.constant 0 : index
    %c0_11 = arith.constant 0 : index
    %15 = vector.load %arg6[%c0_10, %c0_11] : memref<64x128xf32, #tpu.memory_space<vmem>>, vector<64x128xf32>
    %c0_12 = arith.constant 0 : index
    %c0_13 = arith.constant 0 : index
    %16 = vector.load %arg7[%c0_12, %c0_13] : memref<1x128xf32, #tpu.memory_space<vmem>>, vector<1x128xf32>
    %cst_14 = arith.constant dense<0.000000e+00> : vector<32x128xf32>
    %17 = tpu.matmul %14, %15, %cst_14 {dimension_numbers = #tpu.dot_dimension_numbers<[1], [0], [0], [1], [0, 0, 1, 1], [], []>} : vector<32x64xf32>, vector<64x128xf32>, vector<32x128xf32> -> vector<32x128xf32>
    %18 = vector.broadcast %16 : vector<1x128xf32> to vector<32x128xf32>
    %19 = arith.addf %17, %18 : vector<32x128xf32>
    %20 = arith.addf %6, %19 : vector<32x128xf32>
    %c0_15 = arith.constant 0 : index
    %c0_16 = arith.constant 0 : index
    %21 = vector.load %arg8[%c0_15, %c0_16] : memref<32x128xf32, #tpu.memory_space<vmem>>, vector<32x128xf32>
    tpu.vector_store %arg8[%c0_15, %c0_16], %20 {strides = array<i32>} : memref<32x128xf32, #tpu.memory_space<vmem>>, vector<32x128xf32>,
    return
  }
  func.func @transform_0(%arg0: i32) -> (i32, i32) {
    %c0_i32 = arith.constant 0 : i32
    %c0_i32_0 = arith.constant 0 : i32
    return %arg0, %c0_i32 : i32, i32
  }
  func.func @transform_1(%arg0: i32) -> (i32, i32) {
    %c0_i32 = arith.constant 0 : i32
    %c0_i32_0 = arith.constant 0 : i32
    %c0_i32_1 = arith.constant 0 : i32
    return %c0_i32, %c0_i32_0 : i32, i32
  }
  func.func @transform_2(%arg0: i32) -> (i32, i32) {
    %c0_i32 = arith.constant 0 : i32
    %c0_i32_0 = arith.constant 0 : i32
    %c0_i32_1 = arith.constant 0 : i32
    return %c0_i32, %c0_i32_0 : i32, i32
  }
  func.func @transform_3(%arg0: i32) -> (i32, i32) {
    %c0_i32 = arith.constant 0 : i32
    %c0_i32_0 = arith.constant 0 : i32
    %c0_i32_1 = arith.constant 0 : i32
    return %c0_i32, %c0_i32_0 : i32, i32
  }
  func.func @transform_4(%arg0: i32) -> (i32, i32) {
    %c0_i32 = arith.constant 0 : i32
    %c0_i32_0 = arith.constant 0 : i32
    %c0_i32_1 = arith.constant 0 : i32
    return %c0_i32, %c0_i32_0 : i32, i32
  }
  func.func @transform_5(%arg0: i32) -> (i32, i32) {
    %c0_i32 = arith.constant 0 : i32
    %c0_i32_0 = arith.constant 0 : i32
    %c0_i32_1 = arith.constant 0 : i32
    return %c0_i32, %c0_i32_0 : i32, i32
  }
  func.func @transform_6(%arg0: i32) -> (i32, i32) {
    %c0_i32 = arith.constant 0 : i32
    %c0_i32_0 = arith.constant 0 : i32
    %c0_i32_1 = arith.constant 0 : i32
    return %c0_i32, %c0_i32_0 : i32, i32
  }
  func.func @transform_7(%arg0: i32) -> (i32, i32) {
    %c0_i32 = arith.constant 0 : i32
    %c0_i32_0 = arith.constant 0 : i32
    return %arg0, %c0_i32 : i32, i32
  }
}

</mosaic_0001>

<llo_original>
// kernel: tpu_custom_call.1
$region0: #{tpu_custom_call.1}
  #allocation0 [shape = 'u32[]', space=smem, size = 0x4, offset = 0x4, fixed_abs, tag = 'smem constant byte address 0x4 - core index']
  #allocation1 [shape = 'u32[72,128]{1,0:T(1,128)}', space=vmem, size = 0x9000, scoped, tag = 'internal scratch']
  %s0 = inlined_call_operand.vmem [shape: f32[32,8], index: 0, kind: input, shape index: {}]
  %s1 = inlined_call_operand.vmem [shape: f32[8,192], index: 1, kind: input, shape index: {}]
  %s2 = inlined_call_operand.vmem [shape: f32[1,192], index: 2, kind: input, shape index: {}]
  %s3 = inlined_call_operand.hbm [shape: f32[64,64], index: 3, kind: input, shape index: {}]
  %s4 = inlined_call_operand.vmem [shape: f32[1,64], index: 4, kind: input, shape index: {}]
  %s5 = inlined_call_operand.hbm [shape: f32[64,128], index: 5, kind: input, shape index: {}]
  %s6 = inlined_call_operand.vmem [shape: f32[1,128], index: 6, kind: input, shape index: {}]
  %s7 = inlined_call_operand.hbm [shape: f32[32,128], index: 7, kind: output, shape index: {}]
  %s8 = sld [smem:[#allocation0]]
  $region46: #{tpu_custom_call.1} parent=0
    _
  %s10 = ssub.s32 1, %s8
  %s11 = scalar_select 0, %s10, %s8
  $region1: #{tpu_custom_call.1} parent=0
    #allocation2 [shape = 'u8[32768]{0}', space=vmem, size = 0x8000, scoped, tag = 'input window, operand 3, single buffered']
    #allocation3 [shape = 's32[1]{0}', space=sflag, size = 0x4, scoped, tag = 'scoped memory for tpu_custom_call.1']
    #allocation4 [shape = 's32[1]{0}', space=sflag, size = 0x4, scoped, tag = 'scoped memory for tpu_custom_call.1']
    #allocation5 [shape = 'u8[32768]{0}', space=vmem, size = 0x8000, scoped, tag = 'input window, operand 5, single buffered']
    #allocation6 [shape = 's32[1]{0}', space=sflag, size = 0x4, scoped, tag = 'scoped memory for tpu_custom_call.1']
    #allocation7 [shape = 'u8[16384]{0}', space=vmem, size = 0x4000, scoped, tag = 'output window, operand 0, single buffered']
    %12 = vsyncpa [#allocation3], 0
    %13 = vsyncpa [#allocation6], 0
    %14 = vsyncpa [#allocation4], 0
    // Predicated region
    $region2: #{tpu_custom_call.1} parent=1 // pred_check
      _
    $region3: #{tpu_custom_call.1} parent=1 // pred_check_branch
      %16 = sbr.rel (0) target = $region5
    $region4: #{tpu_custom_call.1} parent=1 // pred_region
      _
    $region5: #{tpu_custom_call.1} parent=1 // pred_fallthru
      _
    // Predicated region
    $region6: #{tpu_custom_call.1} parent=1 // pred_check
      _
    $region7: #{tpu_custom_call.1} parent=1 // pred_check_branch
      %18 = sbr.rel (0) target = $region9
    $region8: #{tpu_custom_call.1} parent=1 // pred_region
      _
    $region9: #{tpu_custom_call.1} parent=1 // pred_fallthru
      _
    // Predicated region
    $region10: #{tpu_custom_call.1} parent=1 // pred_check
      _
    $region11: #{tpu_custom_call.1} parent=1 // pred_check_branch
      %20 = sbr.rel (0) target = $region13
    $region12: #{tpu_custom_call.1} parent=1 // pred_region
      _
    $region13: #{tpu_custom_call.1} parent=1 // pred_fallthru
      _
    // Predicated region
    $region14: #{tpu_custom_call.1} parent=1 // pred_check
      _
    $region15: #{tpu_custom_call.1} parent=1 // pred_check_branch
      %22 = sbr.rel (0) target = $region17
    $region16: #{tpu_custom_call.1} parent=1 // pred_region
      %24 = vsyncadd [#allocation3], 0
      %s25 = sshll.u32 %s3, 4
      %s26 = int_to_ptr.hbm [resolvable:$true] %s25
      %s27 = sshll.u32 [#allocation2], 4
      %s28 = int_to_ptr.vmem [resolvable:$true] %s27
      %33 = dma.hbm_to_vmem [thread:$0]  %s26, 1024, %s28, [#allocation3], 128, 128, 8
    $region17: #{tpu_custom_call.1} parent=1 // pred_fallthru
      _
    // Predicated region
    $region18: #{tpu_custom_call.1} parent=1 // pred_check
      _
    $region19: #{tpu_custom_call.1} parent=1 // pred_check_branch
      %35 = sbr.rel (0) target = $region21
    $region20: #{tpu_custom_call.1} parent=1 // pred_region
      _
    $region21: #{tpu_custom_call.1} parent=1 // pred_fallthru
      _
    // Predicated region
    $region22: #{tpu_custom_call.1} parent=1 // pred_check
      _
    $region23: #{tpu_custom_call.1} parent=1 // pred_check_branch
      %37 = sbr.rel (0) target = $region25
    $region24: #{tpu_custom_call.1} parent=1 // pred_region
      %39 = vsyncadd [#allocation6], 0
      %s40 = sshll.u32 %s5, 4
      %s41 = int_to_ptr.hbm [resolvable:$true] %s40
      %s42 = sshll.u32 [#allocation5], 4
      %s43 = int_to_ptr.vmem [resolvable:$true] %s42
      %48 = dma.hbm_to_vmem [thread:$0]  %s41, 1024, %s43, [#allocation6], 128, 128, 8
    $region25: #{tpu_custom_call.1} parent=1 // pred_fallthru
      _
    // Predicated region
    $region26: #{tpu_custom_call.1} parent=1 // pred_check
      _
    $region27: #{tpu_custom_call.1} parent=1 // pred_check_branch
      %50 = sbr.rel (0) target = $region29
    $region28: #{tpu_custom_call.1} parent=1 // pred_region
      _
    $region29: #{tpu_custom_call.1} parent=1 // pred_fallthru
      _
    // Predicated region
    $region30: #{tpu_custom_call.1} parent=1 // pred_check
      _
    $region31: #{tpu_custom_call.1} parent=1 // pred_check_branch
      %52 = sbr.rel (0) target = $region33
    $region32: #{tpu_custom_call.1} parent=1 // pred_region
      %54 = dma.done [#allocation3], 1024
    $region33: #{tpu_custom_call.1} parent=1 // pred_fallthru
      _
    // Predicated region
    $region34: #{tpu_custom_call.1} parent=1 // pred_check
      _
    $region35: #{tpu_custom_call.1} parent=1 // pred_check_branch
      %56 = sbr.rel (0) target = $region37
    $region36: #{tpu_custom_call.1} parent=1 // pred_region
      %58 = dma.done [#allocation6], 1024
    $region37: #{tpu_custom_call.1} parent=1 // pred_fallthru
      _
    %v59 = vld [vmem:[%s0] sm:$0xff]
    %v60 = vld [vmem:[%s0 + $0x8] sm:$0xff]
    %v61 = vld [vmem:[%s0 + $0x10] sm:$0xff]
    %v62 = vld [vmem:[%s0 + $0x18] sm:$0xff]
    %v63 = vld [vmem:[%s1] sm:$0xff]
    %v64 = vld [vmem:[%s1 + $0x8] sm:$0xff]
    %v65 = vld [vmem:[%s2] sm:$0x3]
    %v67 = vperm.slane %v65, 0
    %v68 = vperm.slane %v65, 1
    %vm71 = vcmask 64512
    %v73 = vsel %vm71, %v59, 0
    %v76 = vsel %vm71, %v60, 0
    %v79 = vsel %vm71, %v61, 0
    %v82 = vsel %vm71, %v62, 0
    %84 = vmatpush.msra.mxu0 0.0
    %85 = vmatpush.msra.mxu0 0.0
    %86 = vmatpush.msra.mxu0 0.0
    %87 = vmatpush.msra.mxu0 0.0
    %88 = vmatpush.msra.mxu0 0.0
    %89 = vmatpush.msra.mxu0 0.0
    %90 = vmatpush.msra.mxu0 0.0
    %91 = vmatpush.msra.mxu0 0.0
    %92 = vmatpush.msra.mxu0 0.0
    %93 = vmatpush.msra.mxu0 0.0
    %94 = vmatpush.msra.mxu0 0.0
    %95 = vmatpush.msra.mxu0 0.0
    %96 = vmatpush.msra.mxu0 0.0
    %97 = vmatpush.msra.mxu0 0.0
    %98 = vmatpush.msra.mxu0 0.0
    %99 = vmatpush.msra.mxu0 %v63
    %100 = vmatmul.f32.gmra.mxu0 %v73
    %v101 = vpop.f32.mrf.mxu0
    %v102 = vadd.f32 %v67, %v101
    %103 = vmatmul.f32.gmra.mxu0 %v76
    %v104 = vpop.f32.mrf.mxu0
    %v105 = vadd.f32 %v67, %v104
    %106 = vmatmul.f32.gmra.mxu0 %v79
    %v107 = vpop.f32.mrf.mxu0
    %v108 = vadd.f32 %v67, %v107
    %109 = vmatmul.f32.gmra.mxu0 %v82
    %v110 = vpop.f32.mrf.mxu0
    %v111 = vadd.f32 %v67, %v110
    %112 = vdwg.mxu0
    %113 = vmatpush.msra.mxu0 0.0
    %114 = vmatpush.msra.mxu0 0.0
    %115 = vmatpush.msra.mxu0 0.0
    %116 = vmatpush.msra.mxu0 0.0
    %117 = vmatpush.msra.mxu0 0.0
    %118 = vmatpush.msra.mxu0 0.0
    %119 = vmatpush.msra.mxu0 0.0
    %120 = vmatpush.msra.mxu0 0.0
    %121 = vmatpush.msra.mxu0 0.0
    %122 = vmatpush.msra.mxu0 0.0
    %123 = vmatpush.msra.mxu0 0.0
    %124 = vmatpush.msra.mxu0 0.0
    %125 = vmatpush.msra.mxu0 0.0
    %126 = vmatpush.msra.mxu0 0.0
    %127 = vmatpush.msra.mxu0 0.0
    %128 = vmatpush.msra.mxu0 %v64
    %129 = vmatmul.f32.gmra.mxu0 %v73
    %v130 = vpop.f32.mrf.mxu0
    %v131 = vadd.f32 %v68, %v130
    %132 = vmatmul.f32.gmra.mxu0 %v76
    %v133 = vpop.f32.mrf.mxu0
    %v134 = vadd.f32 %v68, %v133
    %135 = vmatmul.f32.gmra.mxu0 %v79
    %v136 = vpop.f32.mrf.mxu0
    %v137 = vadd.f32 %v68, %v136
    %138 = vmatmul.f32.gmra.mxu0 %v82
    %v139 = vpop.f32.mrf.mxu0
    %v140 = vadd.f32 %v68, %v139
    %141 = vdwg.mxu0
    %v142 = vtanh.pop %v131
    %v143 = vtanh.pop %v134
    %v144 = vtanh.pop %v137
    %v145 = vtanh.pop %v140
    %v146 = vld [vmem:[#allocation2] sm:$0xff]
    %v147 = vld [vmem:[#allocation2 + $0x8] sm:$0xff]
    %v148 = vld [vmem:[#allocation2 + $0x10] sm:$0xff]
    %v149 = vld [vmem:[#allocation2 + $0x18] sm:$0xff]
    %v150 = vld [vmem:[#allocation2 + $0x20] sm:$0xff]
    %v151 = vld [vmem:[#allocation2 + $0x28] sm:$0xff]
    %v152 = vld [vmem:[#allocation2 + $0x30] sm:$0xff]
    %v153 = vld [vmem:[#allocation2 + $0x38] sm:$0xff]
    %v154 = vld [vmem:[%s4] sm:$0x1]
    %v156 = vperm.slane %v154, 0
    %vm158 = vcmask 523264
    %v160 = vsel %vm158, %v142, 0
    %v163 = vsel %vm158, %v143, 0
    %v166 = vsel %vm158, %v144, 0
    %v169 = vsel %vm158, %v145, 0
    %171 = vmatpush.msra.mxu0 0.0
    %172 = vmatpush.msra.mxu0 0.0
    %173 = vmatpush.msra.mxu0 0.0
    %174 = vmatpush.msra.mxu0 0.0
    %175 = vmatpush.msra.mxu0 0.0
    %176 = vmatpush.msra.mxu0 0.0
    %177 = vmatpush.msra.mxu0 0.0
    %178 = vmatpush.msra.mxu0 0.0
    %179 = vmatpush.msra.mxu0 %v153
    %180 = vmatpush.msra.mxu0 %v152
    %181 = vmatpush.msra.mxu0 %v151
    %182 = vmatpush.msra.mxu0 %v150
    %183 = vmatpush.msra.mxu0 %v149
    %184 = vmatpush.msra.mxu0 %v148
    %185 = vmatpush.msra.mxu0 %v147
    %186 = vmatpush.msra.mxu0 %v146
    %187 = vmatmul.f32.gmra.mxu0 %v160
    %v188 = vpop.f32.mrf.mxu0
    %v189 = vadd.f32 %v156, %v188
    %190 = vmatmul.f32.gmra.mxu0 %v163
    %v191 = vpop.f32.mrf.mxu0
    %v192 = vadd.f32 %v156, %v191
    %193 = vmatmul.f32.gmra.mxu0 %v166
    %v194 = vpop.f32.mrf.mxu0
    %v195 = vadd.f32 %v156, %v194
    %196 = vmatmul.f32.gmra.mxu0 %v169
    %v197 = vpop.f32.mrf.mxu0
    %v198 = vadd.f32 %v156, %v197
    %199 = vdwg.mxu0
    %v200 = vtanh.pop %v189
    %v201 = vtanh.pop %v192
    %v202 = vtanh.pop %v195
    %v203 = vtanh.pop %v198
    %v204 = vld [vmem:[#allocation5] sm:$0xff]
    %v205 = vld [vmem:[#allocation5 + $0x8] sm:$0xff]
    %v206 = vld [vmem:[#allocation5 + $0x10] sm:$0xff]
    %v207 = vld [vmem:[#allocation5 + $0x18] sm:$0xff]
    %v208 = vld [vmem:[#allocation5 + $0x20] sm:$0xff]
    %v209 = vld [vmem:[#allocation5 + $0x28] sm:$0xff]
    %v210 = vld [vmem:[#allocation5 + $0x30] sm:$0xff]
    %v211 = vld [vmem:[#allocation5 + $0x38] sm:$0xff]
    %v212 = vld [vmem:[%s6] sm:$0x1]
    %v214 = vperm.slane %v212, 0
    %v217 = vsel %vm158, %v200, 0
    %v220 = vsel %vm158, %v201, 0
    %v223 = vsel %vm158, %v202, 0
    %v226 = vsel %vm158, %v203, 0
    %228 = vmatpush.msra.mxu0 0.0
    %229 = vmatpush.msra.mxu0 0.0
    %230 = vmatpush.msra.mxu0 0.0
    %231 = vmatpush.msra.mxu0 0.0
    %232 = vmatpush.msra.mxu0 0.0
    %233 = vmatpush.msra.mxu0 0.0
    %234 = vmatpush.msra.mxu0 0.0
    %235 = vmatpush.msra.mxu0 0.0
    %236 = vmatpush.msra.mxu0 %v211
    %237 = vmatpush.msra.mxu0 %v210
    %238 = vmatpush.msra.mxu0 %v209
    %239 = vmatpush.msra.mxu0 %v208
    %240 = vmatpush.msra.mxu0 %v207
    %241 = vmatpush.msra.mxu0 %v206
    %242 = vmatpush.msra.mxu0 %v205
    %243 = vmatpush.msra.mxu0 %v204
    %244 = vmatmul.f32.gmra.mxu0 %v217
    %v245 = vpop.f32.mrf.mxu0
    %v246 = vadd.f32 %v214, %v245
    %247 = vmatmul.f32.gmra.mxu0 %v220
    %v248 = vpop.f32.mrf.mxu0
    %v249 = vadd.f32 %v214, %v248
    %250 = vmatmul.f32.gmra.mxu0 %v223
    %v251 = vpop.f32.mrf.mxu0
    %v252 = vadd.f32 %v214, %v251
    %253 = vmatmul.f32.gmra.mxu0 %v226
    %v254 = vpop.f32.mrf.mxu0
    %v255 = vadd.f32 %v214, %v254
    %256 = vdwg.mxu0
    %v257 = vadd.f32 %v102, %v246
    %v258 = vadd.f32 %v105, %v249
    %v259 = vadd.f32 %v108, %v252
    %v260 = vadd.f32 %v111, %v255
    %261 = vst [vmem:[#allocation7] sm:$0xff] %v257
    %262 = vst [vmem:[#allocation7 + $0x8] sm:$0xff] %v258
    %263 = vst [vmem:[#allocation7 + $0x10] sm:$0xff] %v259
    %264 = vst [vmem:[#allocation7 + $0x18] sm:$0xff] %v260
    // Predicated region
    $region38: #{tpu_custom_call.1} parent=1 // pred_check
      _
    $region39: #{tpu_custom_call.1} parent=1 // pred_check_branch
      %266 = sbr.rel (0) target = $region41
    $region40: #{tpu_custom_call.1} parent=1 // pred_region
      %268 = vsyncadd [#allocation4], 0
      %s269 = sshll.u32 [#allocation7], 4
      %s270 = int_to_ptr.vmem [resolvable:$true] %s269
      %s271 = sshll.u32 %s7, 4
      %s272 = int_to_ptr.hbm [resolvable:$true] %s271
      %277 = dma.vmem_to_hbm [thread:$0]  %s270, 512, %s272, [#allocation4], 128, 128, 8
    $region41: #{tpu_custom_call.1} parent=1 // pred_fallthru
      _
    // Predicated region
    $region42: #{tpu_custom_call.1} parent=1 // pred_check
      _
    $region43: #{tpu_custom_call.1} parent=1 // pred_check_branch
      %279 = sbr.rel (0) target = $region45
    $region44: #{tpu_custom_call.1} parent=1 // pred_region
      %281 = dma.done [#allocation4], 512
    $region45: #{tpu_custom_call.1} parent=1 // pred_fallthru
      _
    %282 = vsyncpa [#allocation3], 1
    %283 = vsyncpa [#allocation6], 1
    %284 = vsyncpa [#allocation4], 1

</llo_original>
